<compile_context>
chip_gen: v7x
topology: tpu7x:2x2x1
jax: 0.10.0
libtpu: 0.0.40
codegen_flags: <defaults>
</compile_context>

<pallas_src>
import jax
import jax.numpy as jnp
import numpy as np
from jax import lax
from jax.experimental import pallas as pl
from jax.experimental.pallas import tpu as pltpu


def _round_up(x, m):
    return (x + m - 1) // m * m


def _choose_t_blk(S, Bblk, G, Hp, vmem_budget_bytes):
    """Largest divisor of S whose double-buffered gi/out blocks fit the budget."""
    fixed = 2 * Hp * G * 2            # W_hh (bf16), double-buffered
    fixed += 10 * Bblk * Hp * 4       # h0/c0 in + hn/cn out (x2 buffers) + carries
    per_t = 2 * Bblk * (G + Hp) * 4   # gi block + lstm_out block, double-buffered f32
    max_t = max(1, (vmem_budget_bytes - fixed) // per_t)
    max_t = min(int(max_t), S)
    for t in range(max_t, 0, -1):
        if S % t == 0:
            return t
    return 1


def _sigmoid(x):
    # logistic(x) == 0.5*tanh(0.5*x) + 0.5 : a single EUP push per gate.
    return 0.5 * jnp.tanh(0.5 * x) + 0.5


def _lstm_rec_kernel(gi_ref, whh_ref, h0_ref, c0_ref,
                     out_ref, hn_ref, cn_ref,
                     h_scr, c_scr):
    """One grid step == t_blk timesteps of the LSTM recurrence for one batch shard.

    gi_ref : (t_blk, Bblk, G)  precomputed x@W_ih^T + b_ih + b_hh (f32).
    whh_ref: (Hp, G)           hidden->gates weights, bf16 (MXU operand only).
    h0_ref : (Bblk, Hp) f32    initial hidden state.
    c0_ref : (Bblk, Hp) f32    initial cell state.
    out_ref: (t_blk, Bblk, Hp) hidden states for this time block.
    hn_ref : (Bblk, Hp)        final hidden state (written on last time step).
    cn_ref : (Bblk, Hp)        final cell state   (written on last time step).
    h_scr,c_scr: (Bblk, Hp) f32 VMEM carries across grid steps.
    """
    t = pl.program_id(1)

    @pl.when(t == 0)
    def _():
        h_scr[...] = h0_ref[...]
        c_scr[...] = c0_ref[...]

    t_blk = gi_ref.shape[0]
    Hp = h_scr.shape[-1]

    # Loop-invariant RHS, VMEM-resident; bf16 halves MXU push traffic.
    whh = whh_ref[...]                              # (Hp, G) bf16

    def step(j, carry):
        h_prev, c_prev = carry                      # f32 carries
        gh = jnp.dot(h_prev.astype(whh.dtype), whh,
                     preferred_element_type=jnp.float32)
        g = gi_ref[j] + gh                          # (Bblk, G); biases pre-folded
        i_g = _sigmoid(g[:, 0 * Hp:1 * Hp])
        f_g = _sigmoid(g[:, 1 * Hp:2 * Hp])
        g_g = jnp.tanh(g[:, 2 * Hp:3 * Hp])
        o_g = _sigmoid(g[:, 3 * Hp:4 * Hp])
        c_new = f_g * c_prev + i_g * g_g
        h_new = o_g * jnp.tanh(c_new)
        out_ref[j] = h_new
        return h_new, c_new

    h_fin, c_fin = lax.fori_loop(0, t_blk, step,
                                 (h_scr[...], c_scr[...]),
                                 unroll=min(t_blk, 8))

    h_scr[...] = h_fin
    c_scr[...] = c_fin

    @pl.when(t == pl.num_programs(1) - 1)
    def _():
        hn_ref[...] = h_fin
        cn_ref[...] = c_fin


def lstm1fc_forward(x, h, params, *, t_blk=None, mxu_dtype=jnp.bfloat16):
    """x: (B, S, I) f32, h: (h0, c0) each (1, B, H) -> (p (B,S,O), (h_n, c_n))."""
    h0, c0 = h
    B, S, I = x.shape
    H = h0.shape[-1]
    O = params["fc_w"].shape[0]

    # Gate-lane layout: pack gates contiguously when already lane-aligned
    # (H % 128 == 0) or when all four fit in one vreg (4*H <= 128);
    # otherwise pad each gate to its own 128-lane slot.
    if H % 128 == 0 or 4 * H <= 128:
        Hp = H
    else:
        Hp = _round_up(H, 128)
    G = 4 * Hp

    Bp = _round_up(B, 8)                              # dense sublanes / MXU LHS rows
    nb = 2 if (Bp >= 16 and Bp % 16 == 0) else 1      # v7x: one batch shard per TC
    Bblk = Bp // nb

    if t_blk is None:
        t_blk = _choose_t_blk(S, Bblk, G, Hp, vmem_budget_bytes=40 << 20)
    assert S % t_blk == 0
    nt = S // t_blk

    # --- Weight layout (PyTorch gate order [i, f, g, o]) -------------------
    w_ih = params["w_ih"].reshape(4, H, I)
    w_hh = params["w_hh"].reshape(4, H, H)
    b = (params["b_ih"] + params["b_hh"]).reshape(4, H)

    wih_pad = jnp.zeros((4, Hp, I), jnp.float32).at[:, :H, :].set(w_ih)
    whh_pad = jnp.zeros((4, Hp, Hp), jnp.float32).at[:, :H, :H].set(w_hh)
    b_pad = jnp.zeros((4, Hp), jnp.float32).at[:, :H].set(b)

    wih_t = jnp.transpose(wih_pad, (2, 0, 1)).reshape(I, G)      # (I, G)
    whh_t = jnp.transpose(whh_pad, (2, 0, 1)).reshape(Hp, G)     # (Hp, G)
    whh_mxu = whh_t.astype(mxu_dtype)                            # MXU operand only
    b_flat = b_pad.reshape(1, 1, G)

    # --- Hoisted input projection over ALL timesteps (one big matmul) ------
    xp = jnp.zeros((Bp, S, I), jnp.float32).at[:B].set(x)
    gi = jnp.einsum('bsi,ig->sbg', xp, wih_t) + b_flat           # (S, Bp, G)

    h0p = jnp.zeros((Bp, Hp), jnp.float32).at[:B, :H].set(h0[0])
    c0p = jnp.zeros((Bp, Hp), jnp.float32).at[:B, :H].set(c0[0])

    # Explicit VMEM budget (generation-aware: fits v7x's 64 MiB per core).
    est = (2 * t_blk * Bblk * G * 4 +        # gi blocks (double-buffered)
           2 * t_blk * Bblk * Hp * 4 +       # lstm_out blocks
           2 * Hp * G * 2 +                  # W_hh (bf16)
           8 * Bblk * Hp * 4 +               # h0/c0 in, hn/cn out
           2 * Bblk * Hp * 4)                # carries
    vmem_limit = int(min(48 << 20, max(16 << 20, est + (4 << 20))))

    lstm_out, h_n, c_n = pl.pallas_call(
        _lstm_rec_kernel,
        out_shape=(
            jax.ShapeDtypeStruct((S, Bp, Hp), jnp.float32),
            jax.ShapeDtypeStruct((Bp, Hp), jnp.float32),
            jax.ShapeDtypeStruct((Bp, Hp), jnp.float32),
        ),
        grid_spec=pltpu.PrefetchScalarGridSpec(
            num_scalar_prefetch=0,
            grid=(nb, nt),
            in_specs=[
                pl.BlockSpec((t_blk, Bblk, G), lambda b, t: (t, b, 0)),  # gi
                pl.BlockSpec((Hp, G), lambda b, t: (0, 0)),              # W_hh^T (bf16)
                pl.BlockSpec((Bblk, Hp), lambda b, t: (b, 0)),           # h0
                pl.BlockSpec((Bblk, Hp), lambda b, t: (b, 0)),           # c0
            ],
            out_specs=[
                pl.BlockSpec((t_blk, Bblk, Hp), lambda b, t: (t, b, 0)),  # lstm_out
                pl.BlockSpec((Bblk, Hp), lambda b, t: (b, 0)),            # final h
                pl.BlockSpec((Bblk, Hp), lambda b, t: (b, 0)),            # final c
            ],
            scratch_shapes=[pltpu.VMEM((Bblk, Hp), jnp.float32),
                            pltpu.VMEM((Bblk, Hp), jnp.float32)],
        ),
        compiler_params=pltpu.CompilerParams(
            dimension_semantics=("parallel", "arbitrary"),  # batch ∥, time seq
            vmem_limit_bytes=vmem_limit,
        ),
    )(gi, whh_mxu, h0p, c0p)

    # --- Hoisted FC head over ALL timesteps (one big matmul) ---------------
    # Padded hidden lanes of lstm_out are exactly zero (zero-padded h0/c0 and
    # zero-padded W_hh columns keep them at 0), so the zero-padded fc weight
    # makes the head exact; padded batch rows are sliced off.
    fcw_pad = jnp.zeros((O, Hp), jnp.float32).at[:, :H].set(params["fc_w"])
    p = jnp.einsum('sbh,oh->bso', lstm_out, fcw_pad)[:B] + params["fc_b"]

    return p, (h_n[None, :B, :H], c_n[None, :B, :H])


def _reference_forward(x, h, params):
    """Pure-JAX f32 reference of torch.nn.LSTM(batch_first=True) + Linear."""
    h_t, c_t = h[0][0], h[1][0]
    H = h_t.shape[-1]
    outs = []
    for t in range(x.shape[1]):
        gi = x[:, t, :] @ params["w_ih"].T + params["b_ih"]
        gh = h_t @ params["w_hh"].T + params["b_hh"]
        g = gi + gh
        i = jax.nn.sigmoid(g[:, 0 * H:1 * H])
        f = jax.nn.sigmoid(g[:, 1 * H:2 * H])
        gg = jnp.tanh(g[:, 2 * H:3 * H])
        o = jax.nn.sigmoid(g[:, 3 * H:4 * H])
        c_t = f * c_t + i * gg
        h_t = o * jnp.tanh(c_t)
        outs.append(h_t)
    lstm_out = jnp.stack(outs, axis=1)                  # (B, S, H)
    p = lstm_out @ params["fc_w"].T + params["fc_b"]
    return p, (h_t[None], c_t[None])


def make_params(key, n_inputs, n_outputs, n_hidden):
    """Deterministic PyTorch-style uniform(-1/sqrt(H), 1/sqrt(H)) init."""
    ks = jax.random.split(key, 6)
    k = 1.0 / np.sqrt(n_hidden)
    u = lambda kk, shape: jax.random.uniform(kk, shape, jnp.float32, -k, k)
    return {
        "w_ih": u(ks[0], (4 * n_hidden, n_inputs)),
        "w_hh": u(ks[1], (4 * n_hidden, n_hidden)),
        "b_ih": u(ks[2], (4 * n_hidden,)),
        "b_hh": u(ks[3], (4 * n_hidden,)),
        "fc_w": u(ks[4], (n_outputs, n_hidden)),
        "fc_b": u(ks[5], (n_outputs,)),
    }


if __name__ == "__main__":
    B, S, I, H, O = 2, 8, 4, 32, 8

    key = jax.random.PRNGKey(0)
    k_x, k_h, k_c, k_p = jax.random.split(key, 4)
    x = jax.random.normal(k_x, (B, S, I), jnp.float32)
    h0 = jax.random.normal(k_h, (1, B, H), jnp.float32)
    c0 = jax.random.normal(k_c, (1, B, H), jnp.float32)
    params = make_params(k_p, I, O, H)

    fwd = jax.jit(lstm1fc_forward)
    p, (h_n, c_n) = fwd(x, (h0, c0), params)
    jax.block_until_ready((p, h_n, c_n))

    p_ref, (h_ref, c_ref) = _reference_forward(x, (h0, c0), params)
    # bf16 MXU operands in the recurrence -> relaxed tolerance vs f32 reference.
    np.testing.assert_allclose(np.asarray(p), np.asarray(p_ref), atol=2e-2, rtol=2e-2)
    np.testing.assert_allclose(np.asarray(h_n), np.asarray(h_ref), atol=2e-2, rtol=2e-2)
    np.testing.assert_allclose(np.asarray(c_n), np.asarray(c_ref), atol=2e-2, rtol=2e-2)

    assert p.shape == (B, S, O)
    assert h_n.shape == (1, B, H) and c_n.shape == (1, B, H)
    print("KERNEL_OK")
</pallas_src>

<mosaic_0001>
module attributes {stable_mosaic.version = 11 : i64} {
  func.func @_lstm_rec_kernel(%arg0: i32, %arg1: i32, %arg2: memref<8x8x128xf32, #tpu.memory_space<vmem>>, %arg3: memref<32x128xbf16, #tpu.memory_space<vmem>>, %arg4: memref<8x32xf32, #tpu.memory_space<vmem>>, %arg5: memref<8x32xf32, #tpu.memory_space<vmem>>, %arg6: memref<8x8x32xf32, #tpu.memory_space<vmem>>, %arg7: memref<8x32xf32, #tpu.memory_space<vmem>>, %arg8: memref<8x32xf32, #tpu.memory_space<vmem>>, %arg9: memref<8x32xf32, #tpu.memory_space<vmem>>, %arg10: memref<8x32xf32, #tpu.memory_space<vmem>>) attributes {dimension_semantics = [#tpu.dimension_semantics<parallel>, #tpu.dimension_semantics<arbitrary>], iteration_bounds = array<i64: 1, 1>, scalar_prefetch = 0 : i64, scratch_operands = 2 : i64, tpu.core_type = #tpu.core_type<tc>, window_params = [{transform_indices = @transform_0, window_bounds = array<i64: 8, 8, 128>}, {pipeline_mode = #tpu.pipeline_mode<synchronous>, transform_indices = @transform_1, window_bounds = array<i64: 32, 128>}, {transform_indices = @transform_2, window_bounds = array<i64: 8, 32>}, {transform_indices = @transform_3, window_bounds = array<i64: 8, 32>}, {transform_indices = @transform_4, window_bounds = array<i64: 8, 8, 32>}, {transform_indices = @transform_5, window_bounds = array<i64: 8, 32>}, {transform_indices = @transform_6, window_bounds = array<i64: 8, 32>}]} {
    %c0_i32 = arith.constant 0 : i32
    %0 = arith.cmpi eq, %arg1, %c0_i32 : i32
    %1 = arith.extui %0 : i1 to i32
    %c0_i32_0 = arith.constant 0 : i32
    %2 = arith.cmpi ne, %1, %c0_i32_0 : i32
    scf.if %2 {
      %c0_124 = arith.constant 0 : index
      %c0_125 = arith.constant 0 : index
      %339 = vector.load %arg4[%c0_124, %c0_125] : memref<8x32xf32, #tpu.memory_space<vmem>>, vector<8x32xf32>
      %c0_126 = arith.constant 0 : index
      %c0_127 = arith.constant 0 : index
      %340 = vector.load %arg9[%c0_126, %c0_127] : memref<8x32xf32, #tpu.memory_space<vmem>>, vector<8x32xf32>
      tpu.vector_store %arg9[%c0_126, %c0_127], %339 {strides = array<i32>} : memref<8x32xf32, #tpu.memory_space<vmem>>, vector<8x32xf32>,
      %c0_128 = arith.constant 0 : index
      %c0_129 = arith.constant 0 : index
      %341 = vector.load %arg5[%c0_128, %c0_129] : memref<8x32xf32, #tpu.memory_space<vmem>>, vector<8x32xf32>
      %c0_130 = arith.constant 0 : index
      %c0_131 = arith.constant 0 : index
      %342 = vector.load %arg10[%c0_130, %c0_131] : memref<8x32xf32, #tpu.memory_space<vmem>>, vector<8x32xf32>
      tpu.vector_store %arg10[%c0_130, %c0_131], %341 {strides = array<i32>} : memref<8x32xf32, #tpu.memory_space<vmem>>, vector<8x32xf32>,
    } else {
    }
    %c0 = arith.constant 0 : index
    %c0_1 = arith.constant 0 : index
    %3 = vector.load %arg3[%c0, %c0_1] : memref<32x128xbf16, #tpu.memory_space<vmem>>, vector<32x128xbf16>
    %c0_2 = arith.constant 0 : index
    %c0_3 = arith.constant 0 : index
    %4 = vector.load %arg9[%c0_2, %c0_3] : memref<8x32xf32, #tpu.memory_space<vmem>>, vector<8x32xf32>
    %c0_4 = arith.constant 0 : index
    %c0_5 = arith.constant 0 : index
    %5 = vector.load %arg10[%c0_4, %c0_5] : memref<8x32xf32, #tpu.memory_space<vmem>>, vector<8x32xf32>
    %c0_i32_6 = arith.constant 0 : i32
    %6 = arith.truncf %4 : vector<8x32xf32> to vector<8x32xbf16>
    %cst = arith.constant dense<0.000000e+00> : vector<8x128xf32>
    %7 = tpu.matmul %6, %3, %cst {dimension_numbers = #tpu.dot_dimension_numbers<[1], [0], [0], [1], [0, 0, 1, 1], [], []>} : vector<8x32xbf16>, vector<32x128xbf16>, vector<8x128xf32> -> vector<8x128xf32>
    %8 = arith.index_cast %c0_i32_6 : i32 to index
    %c0_7 = arith.constant 0 : index
    %c0_8 = arith.constant 0 : index
    %9 = vector.load %arg2[%8, %c0_7, %c0_8] : memref<8x8x128xf32, #tpu.memory_space<vmem>>, vector<1x8x128xf32>
    %10 = vector.shape_cast %9 : vector<1x8x128xf32> to vector<8x128xf32>
    %11 = arith.addf %10, %7 : vector<8x128xf32>
    %12 = vector.extract_strided_slice %11 {offsets = [0, 0], sizes = [8, 32], strides = [1, 1]} : vector<8x128xf32> to vector<8x32xf32>
    %cst_9 = arith.constant 5.000000e-01 : f32
    %13 = vector.broadcast %cst_9 : f32 to vector<8x32xf32>
    %14 = arith.mulf %13, %12 : vector<8x32xf32>
    %15 = math.tanh %14 : vector<8x32xf32>
    %cst_10 = arith.constant 5.000000e-01 : f32
    %16 = vector.broadcast %cst_10 : f32 to vector<8x32xf32>
    %17 = arith.mulf %16, %15 : vector<8x32xf32>
    %cst_11 = arith.constant 5.000000e-01 : f32
    %18 = vector.broadcast %cst_11 : f32 to vector<8x32xf32>
    %19 = arith.addf %17, %18 : vector<8x32xf32>
    %20 = vector.extract_strided_slice %11 {offsets = [0, 32], sizes = [8, 32], strides = [1, 1]} : vector<8x128xf32> to vector<8x32xf32>
    %cst_12 = arith.constant 5.000000e-01 : f32
    %21 = vector.broadcast %cst_12 : f32 to vector<8x32xf32>
    %22 = arith.mulf %21, %20 : vector<8x32xf32>
    %23 = math.tanh %22 : vector<8x32xf32>
    %cst_13 = arith.constant 5.000000e-01 : f32
    %24 = vector.broadcast %cst_13 : f32 to vector<8x32xf32>
    %25 = arith.mulf %24, %23 : vector<8x32xf32>
    %cst_14 = arith.constant 5.000000e-01 : f32
    %26 = vector.broadcast %cst_14 : f32 to vector<8x32xf32>
    %27 = arith.addf %25, %26 : vector<8x32xf32>
    %28 = vector.extract_strided_slice %11 {offsets = [0, 64], sizes = [8, 32], strides = [1, 1]} : vector<8x128xf32> to vector<8x32xf32>
    %29 = math.tanh %28 : vector<8x32xf32>
    %30 = vector.extract_strided_slice %11 {offsets = [0, 96], sizes = [8, 32], strides = [1, 1]} : vector<8x128xf32> to vector<8x32xf32>
    %cst_15 = arith.constant 5.000000e-01 : f32
    %31 = vector.broadcast %cst_15 : f32 to vector<8x32xf32>
    %32 = arith.mulf %31, %30 : vector<8x32xf32>
    %33 = math.tanh %32 : vector<8x32xf32>
    %cst_16 = arith.constant 5.000000e-01 : f32
    %34 = vector.broadcast %cst_16 : f32 to vector<8x32xf32>
    %35 = arith.mulf %34, %33 : vector<8x32xf32>
    %cst_17 = arith.constant 5.000000e-01 : f32
    %36 = vector.broadcast %cst_17 : f32 to vector<8x32xf32>
    %37 = arith.addf %35, %36 : vector<8x32xf32>
    %38 = arith.mulf %27, %5 : vector<8x32xf32>
    %39 = arith.mulf %19, %29 : vector<8x32xf32>
    %40 = arith.addf %38, %39 : vector<8x32xf32>
    %41 = math.tanh %40 : vector<8x32xf32>
    %42 = arith.mulf %37, %41 : vector<8x32xf32>
    %43 = arith.index_cast %c0_i32_6 : i32 to index
    %c0_18 = arith.constant 0 : index
    %c0_19 = arith.constant 0 : index
    %44 = vector.load %arg6[%43, %c0_18, %c0_19] : memref<8x8x32xf32, #tpu.memory_space<vmem>>, vector<1x8x32xf32>
    %45 = vector.shape_cast %44 : vector<1x8x32xf32> to vector<8x32xf32>
    %46 = vector.shape_cast %42 : vector<8x32xf32> to vector<1x8x32xf32>
    tpu.vector_store %arg6[%43, %c0_18, %c0_19], %46 {strides = array<i32>} : memref<8x8x32xf32, #tpu.memory_space<vmem>>, vector<1x8x32xf32>,
    %c1_i32 = arith.constant 1 : i32
    %47 = arith.truncf %42 : vector<8x32xf32> to vector<8x32xbf16>
    %cst_20 = arith.constant dense<0.000000e+00> : vector<8x128xf32>
    %48 = tpu.matmul %47, %3, %cst_20 {dimension_numbers = #tpu.dot_dimension_numbers<[1], [0], [0], [1], [0, 0, 1, 1], [], []>} : vector<8x32xbf16>, vector<32x128xbf16>, vector<8x128xf32> -> vector<8x128xf32>
    %49 = arith.index_cast %c1_i32 : i32 to index
    %c0_21 = arith.constant 0 : index
    %c0_22 = arith.constant 0 : index
    %50 = vector.load %arg2[%49, %c0_21, %c0_22] : memref<8x8x128xf32, #tpu.memory_space<vmem>>, vector<1x8x128xf32>
    %51 = vector.shape_cast %50 : vector<1x8x128xf32> to vector<8x128xf32>
    %52 = arith.addf %51, %48 : vector<8x128xf32>
    %53 = vector.extract_strided_slice %52 {offsets = [0, 0], sizes = [8, 32], strides = [1, 1]} : vector<8x128xf32> to vector<8x32xf32>
    %cst_23 = arith.constant 5.000000e-01 : f32
    %54 = vector.broadcast %cst_23 : f32 to vector<8x32xf32>
    %55 = arith.mulf %54, %53 : vector<8x32xf32>
    %56 = math.tanh %55 : vector<8x32xf32>
    %cst_24 = arith.constant 5.000000e-01 : f32
    %57 = vector.broadcast %cst_24 : f32 to vector<8x32xf32>
    %58 = arith.mulf %57, %56 : vector<8x32xf32>
    %cst_25 = arith.constant 5.000000e-01 : f32
    %59 = vector.broadcast %cst_25 : f32 to vector<8x32xf32>
    %60 = arith.addf %58, %59 : vector<8x32xf32>
    %61 = vector.extract_strided_slice %52 {offsets = [0, 32], sizes = [8, 32], strides = [1, 1]} : vector<8x128xf32> to vector<8x32xf32>
    %cst_26 = arith.constant 5.000000e-01 : f32
    %62 = vector.broadcast %cst_26 : f32 to vector<8x32xf32>
    %63 = arith.mulf %62, %61 : vector<8x32xf32>
    %64 = math.tanh %63 : vector<8x32xf32>
    %cst_27 = arith.constant 5.000000e-01 : f32
    %65 = vector.broadcast %cst_27 : f32 to vector<8x32xf32>
    %66 = arith.mulf %65, %64 : vector<8x32xf32>
    %cst_28 = arith.constant 5.000000e-01 : f32
    %67 = vector.broadcast %cst_28 : f32 to vector<8x32xf32>
    %68 = arith.addf %66, %67 : vector<8x32xf32>
    %69 = vector.extract_strided_slice %52 {offsets = [0, 64], sizes = [8, 32], strides = [1, 1]} : vector<8x128xf32> to vector<8x32xf32>
    %70 = math.tanh %69 : vector<8x32xf32>
    %71 = vector.extract_strided_slice %52 {offsets = [0, 96], sizes = [8, 32], strides = [1, 1]} : vector<8x128xf32> to vector<8x32xf32>
    %cst_29 = arith.constant 5.000000e-01 : f32
    %72 = vector.broadcast %cst_29 : f32 to vector<8x32xf32>
    %73 = arith.mulf %72, %71 : vector<8x32xf32>
    %74 = math.tanh %73 : vector<8x32xf32>
    %cst_30 = arith.constant 5.000000e-01 : f32
    %75 = vector.broadcast %cst_30 : f32 to vector<8x32xf32>
    %76 = arith.mulf %75, %74 : vector<8x32xf32>
    %cst_31 = arith.constant 5.000000e-01 : f32
    %77 = vector.broadcast %cst_31 : f32 to vector<8x32xf32>
    %78 = arith.addf %76, %77 : vector<8x32xf32>
    %79 = arith.mulf %68, %40 : vector<8x32xf32>
    %80 = arith.mulf %60, %70 : vector<8x32xf32>
    %81 = arith.addf %79, %80 : vector<8x32xf32>
    %82 = math.tanh %81 : vector<8x32xf32>
    %83 = arith.mulf %78, %82 : vector<8x32xf32>
    %84 = arith.index_cast %c1_i32 : i32 to index
    %c0_32 = arith.constant 0 : index
    %c0_33 = arith.constant 0 : index
    %85 = vector.load %arg6[%84, %c0_32, %c0_33] : memref<8x8x32xf32, #tpu.memory_space<vmem>>, vector<1x8x32xf32>
    %86 = vector.shape_cast %85 : vector<1x8x32xf32> to vector<8x32xf32>
    %87 = vector.shape_cast %83 : vector<8x32xf32> to vector<1x8x32xf32>
    tpu.vector_store %arg6[%84, %c0_32, %c0_33], %87 {strides = array<i32>} : memref<8x8x32xf32, #tpu.memory_space<vmem>>, vector<1x8x32xf32>,
    %c2_i32 = arith.constant 2 : i32
    %88 = arith.truncf %83 : vector<8x32xf32> to vector<8x32xbf16>
    %cst_34 = arith.constant dense<0.000000e+00> : vector<8x128xf32>
    %89 = tpu.matmul %88, %3, %cst_34 {dimension_numbers = #tpu.dot_dimension_numbers<[1], [0], [0], [1], [0, 0, 1, 1], [], []>} : vector<8x32xbf16>, vector<32x128xbf16>, vector<8x128xf32> -> vector<8x128xf32>
    %90 = arith.index_cast %c2_i32 : i32 to index
    %c0_35 = arith.constant 0 : index
    %c0_36 = arith.constant 0 : index
    %91 = vector.load %arg2[%90, %c0_35, %c0_36] : memref<8x8x128xf32, #tpu.memory_space<vmem>>, vector<1x8x128xf32>
    %92 = vector.shape_cast %91 : vector<1x8x128xf32> to vector<8x128xf32>
    %93 = arith.addf %92, %89 : vector<8x128xf32>
    %94 = vector.extract_strided_slice %93 {offsets = [0, 0], sizes = [8, 32], strides = [1, 1]} : vector<8x128xf32> to vector<8x32xf32>
    %cst_37 = arith.constant 5.000000e-01 : f32
    %95 = vector.broadcast %cst_37 : f32 to vector<8x32xf32>
    %96 = arith.mulf %95, %94 : vector<8x32xf32>
    %97 = math.tanh %96 : vector<8x32xf32>
    %cst_38 = arith.constant 5.000000e-01 : f32
    %98 = vector.broadcast %cst_38 : f32 to vector<8x32xf32>
    %99 = arith.mulf %98, %97 : vector<8x32xf32>
    %cst_39 = arith.constant 5.000000e-01 : f32
    %100 = vector.broadcast %cst_39 : f32 to vector<8x32xf32>
    %101 = arith.addf %99, %100 : vector<8x32xf32>
    %102 = vector.extract_strided_slice %93 {offsets = [0, 32], sizes = [8, 32], strides = [1, 1]} : vector<8x128xf32> to vector<8x32xf32>
    %cst_40 = arith.constant 5.000000e-01 : f32
    %103 = vector.broadcast %cst_40 : f32 to vector<8x32xf32>
    %104 = arith.mulf %103, %102 : vector<8x32xf32>
    %105 = math.tanh %104 : vector<8x32xf32>
    %cst_41 = arith.constant 5.000000e-01 : f32
    %106 = vector.broadcast %cst_41 : f32 to vector<8x32xf32>
    %107 = arith.mulf %106, %105 : vector<8x32xf32>
    %cst_42 = arith.constant 5.000000e-01 : f32
    %108 = vector.broadcast %cst_42 : f32 to vector<8x32xf32>
    %109 = arith.addf %107, %108 : vector<8x32xf32>
    %110 = vector.extract_strided_slice %93 {offsets = [0, 64], sizes = [8, 32], strides = [1, 1]} : vector<8x128xf32> to vector<8x32xf32>
    %111 = math.tanh %110 : vector<8x32xf32>
    %112 = vector.extract_strided_slice %93 {offsets = [0, 96], sizes = [8, 32], strides = [1, 1]} : vector<8x128xf32> to vector<8x32xf32>
    %cst_43 = arith.constant 5.000000e-01 : f32
    %113 = vector.broadcast %cst_43 : f32 to vector<8x32xf32>
    %114 = arith.mulf %113, %112 : vector<8x32xf32>
    %115 = math.tanh %114 : vector<8x32xf32>
    %cst_44 = arith.constant 5.000000e-01 : f32
    %116 = vector.broadcast %cst_44 : f32 to vector<8x32xf32>
    %117 = arith.mulf %116, %115 : vector<8x32xf32>
    %cst_45 = arith.constant 5.000000e-01 : f32
    %118 = vector.broadcast %cst_45 : f32 to vector<8x32xf32>
    %119 = arith.addf %117, %118 : vector<8x32xf32>
    %120 = arith.mulf %109, %81 : vector<8x32xf32>
    %121 = arith.mulf %101, %111 : vector<8x32xf32>
    %122 = arith.addf %120, %121 : vector<8x32xf32>
    %123 = math.tanh %122 : vector<8x32xf32>
    %124 = arith.mulf %119, %123 : vector<8x32xf32>
    %125 = arith.index_cast %c2_i32 : i32 to index
    %c0_46 = arith.constant 0 : index
    %c0_47 = arith.constant 0 : index
    %126 = vector.load %arg6[%125, %c0_46, %c0_47] : memref<8x8x32xf32, #tpu.memory_space<vmem>>, vector<1x8x32xf32>
    %127 = vector.shape_cast %126 : vector<1x8x32xf32> to vector<8x32xf32>
    %128 = vector.shape_cast %124 : vector<8x32xf32> to vector<1x8x32xf32>
    tpu.vector_store %arg6[%125, %c0_46, %c0_47], %128 {strides = array<i32>} : memref<8x8x32xf32, #tpu.memory_space<vmem>>, vector<1x8x32xf32>,
    %c3_i32 = arith.constant 3 : i32
    %129 = arith.truncf %124 : vector<8x32xf32> to vector<8x32xbf16>
    %cst_48 = arith.constant dense<0.000000e+00> : vector<8x128xf32>
    %130 = tpu.matmul %129, %3, %cst_48 {dimension_numbers = #tpu.dot_dimension_numbers<[1], [0], [0], [1], [0, 0, 1, 1], [], []>} : vector<8x32xbf16>, vector<32x128xbf16>, vector<8x128xf32> -> vector<8x128xf32>
    %131 = arith.index_cast %c3_i32 : i32 to index
    %c0_49 = arith.constant 0 : index
    %c0_50 = arith.constant 0 : index
    %132 = vector.load %arg2[%131, %c0_49, %c0_50] : memref<8x8x128xf32, #tpu.memory_space<vmem>>, vector<1x8x128xf32>
    %133 = vector.shape_cast %132 : vector<1x8x128xf32> to vector<8x128xf32>
    %134 = arith.addf %133, %130 : vector<8x128xf32>
    %135 = vector.extract_strided_slice %134 {offsets = [0, 0], sizes = [8, 32], strides = [1, 1]} : vector<8x128xf32> to vector<8x32xf32>
    %cst_51 = arith.constant 5.000000e-01 : f32
    %136 = vector.broadcast %cst_51 : f32 to vector<8x32xf32>
    %137 = arith.mulf %136, %135 : vector<8x32xf32>
    %138 = math.tanh %137 : vector<8x32xf32>
    %cst_52 = arith.constant 5.000000e-01 : f32
    %139 = vector.broadcast %cst_52 : f32 to vector<8x32xf32>
    %140 = arith.mulf %139, %138 : vector<8x32xf32>
    %cst_53 = arith.constant 5.000000e-01 : f32
    %141 = vector.broadcast %cst_53 : f32 to vector<8x32xf32>
    %142 = arith.addf %140, %141 : vector<8x32xf32>
    %143 = vector.extract_strided_slice %134 {offsets = [0, 32], sizes = [8, 32], strides = [1, 1]} : vector<8x128xf32> to vector<8x32xf32>
    %cst_54 = arith.constant 5.000000e-01 : f32
    %144 = vector.broadcast %cst_54 : f32 to vector<8x32xf32>
    %145 = arith.mulf %144, %143 : vector<8x32xf32>
    %146 = math.tanh %145 : vector<8x32xf32>
    %cst_55 = arith.constant 5.000000e-01 : f32
    %147 = vector.broadcast %cst_55 : f32 to vector<8x32xf32>
    %148 = arith.mulf %147, %146 : vector<8x32xf32>
    %cst_56 = arith.constant 5.000000e-01 : f32
    %149 = vector.broadcast %cst_56 : f32 to vector<8x32xf32>
    %150 = arith.addf %148, %149 : vector<8x32xf32>
    %151 = vector.extract_strided_slice %134 {offsets = [0, 64], sizes = [8, 32], strides = [1, 1]} : vector<8x128xf32> to vector<8x32xf32>
    %152 = math.tanh %151 : vector<8x32xf32>
    %153 = vector.extract_strided_slice %134 {offsets = [0, 96], sizes = [8, 32], strides = [1, 1]} : vector<8x128xf32> to vector<8x32xf32>
    %cst_57 = arith.constant 5.000000e-01 : f32
    %154 = vector.broadcast %cst_57 : f32 to vector<8x32xf32>
    %155 = arith.mulf %154, %153 : vector<8x32xf32>
    %156 = math.tanh %155 : vector<8x32xf32>
    %cst_58 = arith.constant 5.000000e-01 : f32
    %157 = vector.broadcast %cst_58 : f32 to vector<8x32xf32>
    %158 = arith.mulf %157, %156 : vector<8x32xf32>
    %cst_59 = arith.constant 5.000000e-01 : f32
    %159 = vector.broadcast %cst_59 : f32 to vector<8x32xf32>
    %160 = arith.addf %158, %159 : vector<8x32xf32>
    %161 = arith.mulf %150, %122 : vector<8x32xf32>
    %162 = arith.mulf %142, %152 : vector<8x32xf32>
    %163 = arith.addf %161, %162 : vector<8x32xf32>
    %164 = math.tanh %163 : vector<8x32xf32>
    %165 = arith.mulf %160, %164 : vector<8x32xf32>
    %166 = arith.index_cast %c3_i32 : i32 to index
    %c0_60 = arith.constant 0 : index
    %c0_61 = arith.constant 0 : index
    %167 = vector.load %arg6[%166, %c0_60, %c0_61] : memref<8x8x32xf32, #tpu.memory_space<vmem>>, vector<1x8x32xf32>
    %168 = vector.shape_cast %167 : vector<1x8x32xf32> to vector<8x32xf32>
    %169 = vector.shape_cast %165 : vector<8x32xf32> to vector<1x8x32xf32>
    tpu.vector_store %arg6[%166, %c0_60, %c0_61], %169 {strides = array<i32>} : memref<8x8x32xf32, #tpu.memory_space<vmem>>, vector<1x8x32xf32>,
    %c4_i32 = arith.constant 4 : i32
    %170 = arith.truncf %165 : vector<8x32xf32> to vector<8x32xbf16>
    %cst_62 = arith.constant dense<0.000000e+00> : vector<8x128xf32>
    %171 = tpu.matmul %170, %3, %cst_62 {dimension_numbers = #tpu.dot_dimension_numbers<[1], [0], [0], [1], [0, 0, 1, 1], [], []>} : vector<8x32xbf16>, vector<32x128xbf16>, vector<8x128xf32> -> vector<8x128xf32>
    %172 = arith.index_cast %c4_i32 : i32 to index
    %c0_63 = arith.constant 0 : index
    %c0_64 = arith.constant 0 : index
    %173 = vector.load %arg2[%172, %c0_63, %c0_64] : memref<8x8x128xf32, #tpu.memory_space<vmem>>, vector<1x8x128xf32>
    %174 = vector.shape_cast %173 : vector<1x8x128xf32> to vector<8x128xf32>
    %175 = arith.addf %174, %171 : vector<8x128xf32>
    %176 = vector.extract_strided_slice %175 {offsets = [0, 0], sizes = [8, 32], strides = [1, 1]} : vector<8x128xf32> to vector<8x32xf32>
    %cst_65 = arith.constant 5.000000e-01 : f32
    %177 = vector.broadcast %cst_65 : f32 to vector<8x32xf32>
    %178 = arith.mulf %177, %176 : vector<8x32xf32>
    %179 = math.tanh %178 : vector<8x32xf32>
    %cst_66 = arith.constant 5.000000e-01 : f32
    %180 = vector.broadcast %cst_66 : f32 to vector<8x32xf32>
    %181 = arith.mulf %180, %179 : vector<8x32xf32>
    %cst_67 = arith.constant 5.000000e-01 : f32
    %182 = vector.broadcast %cst_67 : f32 to vector<8x32xf32>
    %183 = arith.addf %181, %182 : vector<8x32xf32>
    %184 = vector.extract_strided_slice %175 {offsets = [0, 32], sizes = [8, 32], strides = [1, 1]} : vector<8x128xf32> to vector<8x32xf32>
    %cst_68 = arith.constant 5.000000e-01 : f32
    %185 = vector.broadcast %cst_68 : f32 to vector<8x32xf32>
    %186 = arith.mulf %185, %184 : vector<8x32xf32>
    %187 = math.tanh %186 : vector<8x32xf32>
    %cst_69 = arith.constant 5.000000e-01 : f32
    %188 = vector.broadcast %cst_69 : f32 to vector<8x32xf32>
    %189 = arith.mulf %188, %187 : vector<8x32xf32>
    %cst_70 = arith.constant 5.000000e-01 : f32
    %190 = vector.broadcast %cst_70 : f32 to vector<8x32xf32>
    %191 = arith.addf %189, %190 : vector<8x32xf32>
    %192 = vector.extract_strided_slice %175 {offsets = [0, 64], sizes = [8, 32], strides = [1, 1]} : vector<8x128xf32> to vector<8x32xf32>
    %193 = math.tanh %192 : vector<8x32xf32>
    %194 = vector.extract_strided_slice %175 {offsets = [0, 96], sizes = [8, 32], strides = [1, 1]} : vector<8x128xf32> to vector<8x32xf32>
    %cst_71 = arith.constant 5.000000e-01 : f32
    %195 = vector.broadcast %cst_71 : f32 to vector<8x32xf32>
    %196 = arith.mulf %195, %194 : vector<8x32xf32>
    %197 = math.tanh %196 : vector<8x32xf32>
    %cst_72 = arith.constant 5.000000e-01 : f32
    %198 = vector.broadcast %cst_72 : f32 to vector<8x32xf32>
    %199 = arith.mulf %198, %197 : vector<8x32xf32>
    %cst_73 = arith.constant 5.000000e-01 : f32
    %200 = vector.broadcast %cst_73 : f32 to vector<8x32xf32>
    %201 = arith.addf %199, %200 : vector<8x32xf32>
    %202 = arith.mulf %191, %163 : vector<8x32xf32>
    %203 = arith.mulf %183, %193 : vector<8x32xf32>
    %204 = arith.addf %202, %203 : vector<8x32xf32>
    %205 = math.tanh %204 : vector<8x32xf32>
    %206 = arith.mulf %201, %205 : vector<8x32xf32>
    %207 = arith.index_cast %c4_i32 : i32 to index
    %c0_74 = arith.constant 0 : index
    %c0_75 = arith.constant 0 : index
    %208 = vector.load %arg6[%207, %c0_74, %c0_75] : memref<8x8x32xf32, #tpu.memory_space<vmem>>, vector<1x8x32xf32>
    %209 = vector.shape_cast %208 : vector<1x8x32xf32> to vector<8x32xf32>
    %210 = vector.shape_cast %206 : vector<8x32xf32> to vector<1x8x32xf32>
    tpu.vector_store %arg6[%207, %c0_74, %c0_75], %210 {strides = array<i32>} : memref<8x8x32xf32, #tpu.memory_space<vmem>>, vector<1x8x32xf32>,
    %c5_i32 = arith.constant 5 : i32
    %211 = arith.truncf %206 : vector<8x32xf32> to vector<8x32xbf16>
    %cst_76 = arith.constant dense<0.000000e+00> : vector<8x128xf32>
    %212 = tpu.matmul %211, %3, %cst_76 {dimension_numbers = #tpu.dot_dimension_numbers<[1], [0], [0], [1], [0, 0, 1, 1], [], []>} : vector<8x32xbf16>, vector<32x128xbf16>, vector<8x128xf32> -> vector<8x128xf32>
    %213 = arith.index_cast %c5_i32 : i32 to index
    %c0_77 = arith.constant 0 : index
    %c0_78 = arith.constant 0 : index
    %214 = vector.load %arg2[%213, %c0_77, %c0_78] : memref<8x8x128xf32, #tpu.memory_space<vmem>>, vector<1x8x128xf32>
    %215 = vector.shape_cast %214 : vector<1x8x128xf32> to vector<8x128xf32>
    %216 = arith.addf %215, %212 : vector<8x128xf32>
    %217 = vector.extract_strided_slice %216 {offsets = [0, 0], sizes = [8, 32], strides = [1, 1]} : vector<8x128xf32> to vector<8x32xf32>
    %cst_79 = arith.constant 5.000000e-01 : f32
    %218 = vector.broadcast %cst_79 : f32 to vector<8x32xf32>
    %219 = arith.mulf %218, %217 : vector<8x32xf32>
    %220 = math.tanh %219 : vector<8x32xf32>
    %cst_80 = arith.constant 5.000000e-01 : f32
    %221 = vector.broadcast %cst_80 : f32 to vector<8x32xf32>
    %222 = arith.mulf %221, %220 : vector<8x32xf32>
    %cst_81 = arith.constant 5.000000e-01 : f32
    %223 = vector.broadcast %cst_81 : f32 to vector<8x32xf32>
    %224 = arith.addf %222, %223 : vector<8x32xf32>
    %225 = vector.extract_strided_slice %216 {offsets = [0, 32], sizes = [8, 32], strides = [1, 1]} : vector<8x128xf32> to vector<8x32xf32>
    %cst_82 = arith.constant 5.000000e-01 : f32
    %226 = vector.broadcast %cst_82 : f32 to vector<8x32xf32>
    %227 = arith.mulf %226, %225 : vector<8x32xf32>
    %228 = math.tanh %227 : vector<8x32xf32>
    %cst_83 = arith.constant 5.000000e-01 : f32
    %229 = vector.broadcast %cst_83 : f32 to vector<8x32xf32>
    %230 = arith.mulf %229, %228 : vector<8x32xf32>
    %cst_84 = arith.constant 5.000000e-01 : f32
    %231 = vector.broadcast %cst_84 : f32 to vector<8x32xf32>
    %232 = arith.addf %230, %231 : vector<8x32xf32>
    %233 = vector.extract_strided_slice %216 {offsets = [0, 64], sizes = [8, 32], strides = [1, 1]} : vector<8x128xf32> to vector<8x32xf32>
    %234 = math.tanh %233 : vector<8x32xf32>
    %235 = vector.extract_strided_slice %216 {offsets = [0, 96], sizes = [8, 32], strides = [1, 1]} : vector<8x128xf32> to vector<8x32xf32>
    %cst_85 = arith.constant 5.000000e-01 : f32
    %236 = vector.broadcast %cst_85 : f32 to vector<8x32xf32>
    %237 = arith.mulf %236, %235 : vector<8x32xf32>
    %238 = math.tanh %237 : vector<8x32xf32>
    %cst_86 = arith.constant 5.000000e-01 : f32
    %239 = vector.broadcast %cst_86 : f32 to vector<8x32xf32>
    %240 = arith.mulf %239, %238 : vector<8x32xf32>
    %cst_87 = arith.constant 5.000000e-01 : f32
    %241 = vector.broadcast %cst_87 : f32 to vector<8x32xf32>
    %242 = arith.addf %240, %241 : vector<8x32xf32>
    %243 = arith.mulf %232, %204 : vector<8x32xf32>
    %244 = arith.mulf %224, %234 : vector<8x32xf32>
    %245 = arith.addf %243, %244 : vector<8x32xf32>
    %246 = math.tanh %245 : vector<8x32xf32>
    %247 = arith.mulf %242, %246 : vector<8x32xf32>
    %248 = arith.index_cast %c5_i32 : i32 to index
    %c0_88 = arith.constant 0 : index
    %c0_89 = arith.constant 0 : index
    %249 = vector.load %arg6[%248, %c0_88, %c0_89] : memref<8x8x32xf32, #tpu.memory_space<vmem>>, vector<1x8x32xf32>
    %250 = vector.shape_cast %249 : vector<1x8x32xf32> to vector<8x32xf32>
    %251 = vector.shape_cast %247 : vector<8x32xf32> to vector<1x8x32xf32>
    tpu.vector_store %arg6[%248, %c0_88, %c0_89], %251 {strides = array<i32>} : memref<8x8x32xf32, #tpu.memory_space<vmem>>, vector<1x8x32xf32>,
    %c6_i32 = arith.constant 6 : i32
    %252 = arith.truncf %247 : vector<8x32xf32> to vector<8x32xbf16>
    %cst_90 = arith.constant dense<0.000000e+00> : vector<8x128xf32>
    %253 = tpu.matmul %252, %3, %cst_90 {dimension_numbers = #tpu.dot_dimension_numbers<[1], [0], [0], [1], [0, 0, 1, 1], [], []>} : vector<8x32xbf16>, vector<32x128xbf16>, vector<8x128xf32> -> vector<8x128xf32>
    %254 = arith.index_cast %c6_i32 : i32 to index
    %c0_91 = arith.constant 0 : index
    %c0_92 = arith.constant 0 : index
    %255 = vector.load %arg2[%254, %c0_91, %c0_92] : memref<8x8x128xf32, #tpu.memory_space<vmem>>, vector<1x8x128xf32>
    %256 = vector.shape_cast %255 : vector<1x8x128xf32> to vector<8x128xf32>
    %257 = arith.addf %256, %253 : vector<8x128xf32>
    %258 = vector.extract_strided_slice %257 {offsets = [0, 0], sizes = [8, 32], strides = [1, 1]} : vector<8x128xf32> to vector<8x32xf32>
    %cst_93 = arith.constant 5.000000e-01 : f32
    %259 = vector.broadcast %cst_93 : f32 to vector<8x32xf32>
    %260 = arith.mulf %259, %258 : vector<8x32xf32>
    %261 = math.tanh %260 : vector<8x32xf32>
    %cst_94 = arith.constant 5.000000e-01 : f32
    %262 = vector.broadcast %cst_94 : f32 to vector<8x32xf32>
    %263 = arith.mulf %262, %261 : vector<8x32xf32>
    %cst_95 = arith.constant 5.000000e-01 : f32
    %264 = vector.broadcast %cst_95 : f32 to vector<8x32xf32>
    %265 = arith.addf %263, %264 : vector<8x32xf32>
    %266 = vector.extract_strided_slice %257 {offsets = [0, 32], sizes = [8, 32], strides = [1, 1]} : vector<8x128xf32> to vector<8x32xf32>
    %cst_96 = arith.constant 5.000000e-01 : f32
    %267 = vector.broadcast %cst_96 : f32 to vector<8x32xf32>
    %268 = arith.mulf %267, %266 : vector<8x32xf32>
    %269 = math.tanh %268 : vector<8x32xf32>
    %cst_97 = arith.constant 5.000000e-01 : f32
    %270 = vector.broadcast %cst_97 : f32 to vector<8x32xf32>
    %271 = arith.mulf %270, %269 : vector<8x32xf32>
    %cst_98 = arith.constant 5.000000e-01 : f32
    %272 = vector.broadcast %cst_98 : f32 to vector<8x32xf32>
    %273 = arith.addf %271, %272 : vector<8x32xf32>
    %274 = vector.extract_strided_slice %257 {offsets = [0, 64], sizes = [8, 32], strides = [1, 1]} : vector<8x128xf32> to vector<8x32xf32>
    %275 = math.tanh %274 : vector<8x32xf32>
    %276 = vector.extract_strided_slice %257 {offsets = [0, 96], sizes = [8, 32], strides = [1, 1]} : vector<8x128xf32> to vector<8x32xf32>
    %cst_99 = arith.constant 5.000000e-01 : f32
    %277 = vector.broadcast %cst_99 : f32 to vector<8x32xf32>
    %278 = arith.mulf %277, %276 : vector<8x32xf32>
    %279 = math.tanh %278 : vector<8x32xf32>
    %cst_100 = arith.constant 5.000000e-01 : f32
    %280 = vector.broadcast %cst_100 : f32 to vector<8x32xf32>
    %281 = arith.mulf %280, %279 : vector<8x32xf32>
    %cst_101 = arith.constant 5.000000e-01 : f32
    %282 = vector.broadcast %cst_101 : f32 to vector<8x32xf32>
    %283 = arith.addf %281, %282 : vector<8x32xf32>
    %284 = arith.mulf %273, %245 : vector<8x32xf32>
    %285 = arith.mulf %265, %275 : vector<8x32xf32>
    %286 = arith.addf %284, %285 : vector<8x32xf32>
    %287 = math.tanh %286 : vector<8x32xf32>
    %288 = arith.mulf %283, %287 : vector<8x32xf32>
    %289 = arith.index_cast %c6_i32 : i32 to index
    %c0_102 = arith.constant 0 : index
    %c0_103 = arith.constant 0 : index
    %290 = vector.load %arg6[%289, %c0_102, %c0_103] : memref<8x8x32xf32, #tpu.memory_space<vmem>>, vector<1x8x32xf32>
    %291 = vector.shape_cast %290 : vector<1x8x32xf32> to vector<8x32xf32>
    %292 = vector.shape_cast %288 : vector<8x32xf32> to vector<1x8x32xf32>
    tpu.vector_store %arg6[%289, %c0_102, %c0_103], %292 {strides = array<i32>} : memref<8x8x32xf32, #tpu.memory_space<vmem>>, vector<1x8x32xf32>,
    %c7_i32 = arith.constant 7 : i32
    %293 = arith.truncf %288 : vector<8x32xf32> to vector<8x32xbf16>
    %cst_104 = arith.constant dense<0.000000e+00> : vector<8x128xf32>
    %294 = tpu.matmul %293, %3, %cst_104 {dimension_numbers = #tpu.dot_dimension_numbers<[1], [0], [0], [1], [0, 0, 1, 1], [], []>} : vector<8x32xbf16>, vector<32x128xbf16>, vector<8x128xf32> -> vector<8x128xf32>
    %295 = arith.index_cast %c7_i32 : i32 to index
    %c0_105 = arith.constant 0 : index
    %c0_106 = arith.constant 0 : index
    %296 = vector.load %arg2[%295, %c0_105, %c0_106] : memref<8x8x128xf32, #tpu.memory_space<vmem>>, vector<1x8x128xf32>
    %297 = vector.shape_cast %296 : vector<1x8x128xf32> to vector<8x128xf32>
    %298 = arith.addf %297, %294 : vector<8x128xf32>
    %299 = vector.extract_strided_slice %298 {offsets = [0, 0], sizes = [8, 32], strides = [1, 1]} : vector<8x128xf32> to vector<8x32xf32>
    %cst_107 = arith.constant 5.000000e-01 : f32
    %300 = vector.broadcast %cst_107 : f32 to vector<8x32xf32>
    %301 = arith.mulf %300, %299 : vector<8x32xf32>
    %302 = math.tanh %301 : vector<8x32xf32>
    %cst_108 = arith.constant 5.000000e-01 : f32
    %303 = vector.broadcast %cst_108 : f32 to vector<8x32xf32>
    %304 = arith.mulf %303, %302 : vector<8x32xf32>
    %cst_109 = arith.constant 5.000000e-01 : f32
    %305 = vector.broadcast %cst_109 : f32 to vector<8x32xf32>
    %306 = arith.addf %304, %305 : vector<8x32xf32>
    %307 = vector.extract_strided_slice %298 {offsets = [0, 32], sizes = [8, 32], strides = [1, 1]} : vector<8x128xf32> to vector<8x32xf32>
    %cst_110 = arith.constant 5.000000e-01 : f32
    %308 = vector.broadcast %cst_110 : f32 to vector<8x32xf32>
    %309 = arith.mulf %308, %307 : vector<8x32xf32>
    %310 = math.tanh %309 : vector<8x32xf32>
    %cst_111 = arith.constant 5.000000e-01 : f32
    %311 = vector.broadcast %cst_111 : f32 to vector<8x32xf32>
    %312 = arith.mulf %311, %310 : vector<8x32xf32>
    %cst_112 = arith.constant 5.000000e-01 : f32
    %313 = vector.broadcast %cst_112 : f32 to vector<8x32xf32>
    %314 = arith.addf %312, %313 : vector<8x32xf32>
    %315 = vector.extract_strided_slice %298 {offsets = [0, 64], sizes = [8, 32], strides = [1, 1]} : vector<8x128xf32> to vector<8x32xf32>
    %316 = math.tanh %315 : vector<8x32xf32>
    %317 = vector.extract_strided_slice %298 {offsets = [0, 96], sizes = [8, 32], strides = [1, 1]} : vector<8x128xf32> to vector<8x32xf32>
    %cst_113 = arith.constant 5.000000e-01 : f32
    %318 = vector.broadcast %cst_113 : f32 to vector<8x32xf32>
    %319 = arith.mulf %318, %317 : vector<8x32xf32>
    %320 = math.tanh %319 : vector<8x32xf32>
    %cst_114 = arith.constant 5.000000e-01 : f32
    %321 = vector.broadcast %cst_114 : f32 to vector<8x32xf32>
    %322 = arith.mulf %321, %320 : vector<8x32xf32>
    %cst_115 = arith.constant 5.000000e-01 : f32
    %323 = vector.broadcast %cst_115 : f32 to vector<8x32xf32>
    %324 = arith.addf %322, %323 : vector<8x32xf32>
    %325 = arith.mulf %314, %286 : vector<8x32xf32>
    %326 = arith.mulf %306, %316 : vector<8x32xf32>
    %327 = arith.addf %325, %326 : vector<8x32xf32>
    %328 = math.tanh %327 : vector<8x32xf32>
    %329 = arith.mulf %324, %328 : vector<8x32xf32>
    %330 = arith.index_cast %c7_i32 : i32 to index
    %c0_116 = arith.constant 0 : index
    %c0_117 = arith.constant 0 : index
    %331 = vector.load %arg6[%330, %c0_116, %c0_117] : memref<8x8x32xf32, #tpu.memory_space<vmem>>, vector<1x8x32xf32>
    %332 = vector.shape_cast %331 : vector<1x8x32xf32> to vector<8x32xf32>
    %333 = vector.shape_cast %329 : vector<8x32xf32> to vector<1x8x32xf32>
    tpu.vector_store %arg6[%330, %c0_116, %c0_117], %333 {strides = array<i32>} : memref<8x8x32xf32, #tpu.memory_space<vmem>>, vector<1x8x32xf32>,
    %c8_i32 = arith.constant 8 : i32
    %c0_118 = arith.constant 0 : index
    %c0_119 = arith.constant 0 : index
    %334 = vector.load %arg9[%c0_118, %c0_119] : memref<8x32xf32, #tpu.memory_space<vmem>>, vector<8x32xf32>
    tpu.vector_store %arg9[%c0_118, %c0_119], %329 {strides = array<i32>} : memref<8x32xf32, #tpu.memory_space<vmem>>, vector<8x32xf32>,
    %c0_120 = arith.constant 0 : index
    %c0_121 = arith.constant 0 : index
    %335 = vector.load %arg10[%c0_120, %c0_121] : memref<8x32xf32, #tpu.memory_space<vmem>>, vector<8x32xf32>
    tpu.vector_store %arg10[%c0_120, %c0_121], %327 {strides = array<i32>} : memref<8x32xf32, #tpu.memory_space<vmem>>, vector<8x32xf32>,
    %c0_i32_122 = arith.constant 0 : i32
    %336 = arith.cmpi eq, %arg1, %c0_i32_122 : i32
    %337 = arith.extui %336 : i1 to i32
    %c0_i32_123 = arith.constant 0 : i32
    %338 = arith.cmpi ne, %337, %c0_i32_123 : i32
    scf.if %338 {
      %c0_124 = arith.constant 0 : index
      %c0_125 = arith.constant 0 : index
      %339 = vector.load %arg7[%c0_124, %c0_125] : memref<8x32xf32, #tpu.memory_space<vmem>>, vector<8x32xf32>
      tpu.vector_store %arg7[%c0_124, %c0_125], %329 {strides = array<i32>} : memref<8x32xf32, #tpu.memory_space<vmem>>, vector<8x32xf32>,
      %c0_126 = arith.constant 0 : index
      %c0_127 = arith.constant 0 : index
      %340 = vector.load %arg8[%c0_126, %c0_127] : memref<8x32xf32, #tpu.memory_space<vmem>>, vector<8x32xf32>
      tpu.vector_store %arg8[%c0_126, %c0_127], %327 {strides = array<i32>} : memref<8x32xf32, #tpu.memory_space<vmem>>, vector<8x32xf32>,
    } else {
    }
    return
  }
  func.func @transform_0(%arg0: i32, %arg1: i32) -> (i32, i32, i32) {
    %c0_i32 = arith.constant 0 : i32
    %c0_i32_0 = arith.constant 0 : i32
    return %arg1, %arg0, %c0_i32 : i32, i32, i32
  }
  func.func @transform_1(%arg0: i32, %arg1: i32) -> (i32, i32) {
    %c0_i32 = arith.constant 0 : i32
    %c0_i32_0 = arith.constant 0 : i32
    %c0_i32_1 = arith.constant 0 : i32
    return %c0_i32, %c0_i32_0 : i32, i32
  }
  func.func @transform_2(%arg0: i32, %arg1: i32) -> (i32, i32) {
    %c0_i32 = arith.constant 0 : i32
    %c0_i32_0 = arith.constant 0 : i32
    return %arg0, %c0_i32 : i32, i32
  }
  func.func @transform_3(%arg0: i32, %arg1: i32) -> (i32, i32) {
    %c0_i32 = arith.constant 0 : i32
    %c0_i32_0 = arith.constant 0 : i32
    return %arg0, %c0_i32 : i32, i32
  }
  func.func @transform_4(%arg0: i32, %arg1: i32) -> (i32, i32, i32) {
    %c0_i32 = arith.constant 0 : i32
    %c0_i32_0 = arith.constant 0 : i32
    return %arg1, %arg0, %c0_i32 : i32, i32, i32
  }
  func.func @transform_5(%arg0: i32, %arg1: i32) -> (i32, i32) {
    %c0_i32 = arith.constant 0 : i32
    %c0_i32_0 = arith.constant 0 : i32
    return %arg0, %c0_i32 : i32, i32
  }
  func.func @transform_6(%arg0: i32, %arg1: i32) -> (i32, i32) {
    %c0_i32 = arith.constant 0 : i32
    %c0_i32_0 = arith.constant 0 : i32
    return %arg0, %c0_i32 : i32, i32
  }
}

</mosaic_0001>

<llo_original>
// kernel: lstm1fc_forward.1
$region0: #{lstm1fc_forward.1}
  #allocation0 [shape = 'u32[]', space=smem, size = 0x4, offset = 0x4, fixed_abs, tag = 'smem constant byte address 0x4 - core index']
  #allocation1 [shape = 'u32[144,128]{1,0:T(1,128)}', space=vmem, size = 0x12000, scoped, tag = 'internal scratch']
  #allocation2 [shape = 'f32[8,32]{1,0:T(8,128)}', space=vmem, size = 0x1000, scoped, tag = 'scratch operand']
  #allocation3 [shape = 'f32[8,32]{1,0:T(8,128)}', space=vmem, size = 0x1000, scoped, tag = 'scratch operand']
  %s0 = inlined_call_operand.vmem [shape: f32[8,8,128], index: 0, kind: input, shape index: {}]
  %s1 = inlined_call_operand.vmem [shape: bf16[32,128], index: 1, kind: input, shape index: {}]
  %s2 = inlined_call_operand.vmem [shape: f32[8,32], index: 2, kind: input, shape index: {}]
  %s3 = inlined_call_operand.vmem [shape: f32[8,32], index: 3, kind: input, shape index: {}]
  %s4 = inlined_call_operand.vmem [shape: f32[8,8,32], index: 4, kind: output, shape index: {0}]
  %s5 = inlined_call_operand.vmem [shape: f32[8,32], index: 5, kind: output, shape index: {1}]
  %s6 = inlined_call_operand.vmem [shape: f32[8,32], index: 6, kind: output, shape index: {2}]
  %7 = xla_tuple %s4, %s5, %s6
  %s8 = sld [smem:[#allocation0]]
  $region50: #{lstm1fc_forward.1} parent=0
    _
  %s10 = ssub.s32 1, %s8
  %s11 = scalar_select 0, %s10, %s8
  // Predicated region
  $region2: #{lstm1fc_forward.1} parent=0 // pred_check
    _
  $region3: #{lstm1fc_forward.1} parent=0 // pred_check_branch
    %13 = sbr.rel (0) target = $region5
  $region4: #{lstm1fc_forward.1} parent=0 // pred_region
    _
  $region5: #{lstm1fc_forward.1} parent=0 // pred_fallthru
    _
  // Predicated region
  $region6: #{lstm1fc_forward.1} parent=0 // pred_check
    _
  $region7: #{lstm1fc_forward.1} parent=0 // pred_check_branch
    %15 = sbr.rel (0) target = $region9
  $region8: #{lstm1fc_forward.1} parent=0 // pred_region
    _
  $region9: #{lstm1fc_forward.1} parent=0 // pred_fallthru
    _
  // Predicated region
  $region10: #{lstm1fc_forward.1} parent=0 // pred_check
    _
  $region11: #{lstm1fc_forward.1} parent=0 // pred_check_branch
    %17 = sbr.rel (0) target = $region13
  $region12: #{lstm1fc_forward.1} parent=0 // pred_region
    _
  $region13: #{lstm1fc_forward.1} parent=0 // pred_fallthru
    _
  // Predicated region
  $region14: #{lstm1fc_forward.1} parent=0 // pred_check
    _
  $region15: #{lstm1fc_forward.1} parent=0 // pred_check_branch
    %19 = sbr.rel (0) target = $region17
  $region16: #{lstm1fc_forward.1} parent=0 // pred_region
    _
  $region17: #{lstm1fc_forward.1} parent=0 // pred_fallthru
    _
  %p21 = scmp.eq.s32.totalorder 0, 0
  // Predicated region
  $region18: #{lstm1fc_forward.1} parent=0 // pred_check
    %p22 = pneg %p21
  $region19: #{lstm1fc_forward.1} parent=0 // pred_check_branch
    %24 = sbr.rel (%p22) target = $region21
  $region20: #{lstm1fc_forward.1} parent=0 // pred_region
    %v25 = vld [vmem:[%s2] sm:$0xff]
    %vm26 = vcmask 261120
    %27 = vst.msk [vmem:[#allocation2] sm:$0xff] %vm26, %v25
    %v28 = vld [vmem:[%s3] sm:$0xff]
    %29 = vst.msk [vmem:[#allocation3] sm:$0xff] %vm26, %v28
  $region21: #{lstm1fc_forward.1} parent=0 // pred_fallthru
    _
  %v30 = vld [vmem:[%s1] sm:$0xf]
  %v31 = vld [vmem:[%s1 + $0x4] sm:$0xf]
  %v32 = vld [vmem:[%s1 + $0x8] sm:$0xf]
  %v33 = vld [vmem:[%s1 + $0xc] sm:$0xf]
  %v34 = vld [vmem:[#allocation2] sm:$0xff]
  %v35 = vld [vmem:[#allocation3] sm:$0xff]
  %v36 = vpack.c.bf16 %v34, %v34
  %v41 = vunpack.c.l.b16 %v30
  %v42 = vunpack.c.l.b16 %v31
  %v43 = vunpack.c.l.b16 %v32
  %v44 = vunpack.c.l.b16 %v33
  %v45 = vpack.c.b16 %v42, %v41
  %v46 = vpack.c.b16 %v44, %v43
  %vm49 = vcmask 261120
  %v51 = vsel %vm49, %v36, 0
  %53 = vmatprep.subr.bf16.mxu0 0
  %54 = vmatpush1.bf16.msra.mxu0 %v45
  %55 = vmatprep.subr.bf16.mxu0 0
  %56 = vmatpush1.bf16.msra.mxu0 %v46
  %57 = vmatprep.subr.bf16.mxu0 0
  %58 = vmatpush1.bf16.msra.mxu0 0
  %59 = vmatprep.subr.bf16.mxu0 0
  %60 = vmatpush1.bf16.msra.mxu0 0
  %61 = vmatprep.subr.bf16.mxu0 0
  %62 = vmatpush1.bf16.msra.mxu0 0
  %63 = vmatprep.subr.bf16.mxu0 0
  %64 = vmatpush1.bf16.msra.mxu0 0
  %65 = vmatprep.subr.bf16.mxu0 0
  %66 = vmatpush1.bf16.msra.mxu0 0
  %67 = vmatprep.subr.bf16.mxu0 0
  %68 = vmatpush1.bf16.msra.mxu0 0
  %69 = vmatprep.subr.bf16.mxu0 0
  %70 = vmatpush1.bf16.msra.mxu0 0
  %71 = vmatprep.subr.bf16.mxu0 0
  %72 = vmatpush1.bf16.msra.mxu0 0
  %73 = vmatprep.subr.bf16.mxu0 0
  %74 = vmatpush1.bf16.msra.mxu0 0
  %75 = vmatprep.subr.bf16.mxu0 0
  %76 = vmatpush1.bf16.msra.mxu0 0
  %77 = vmatprep.subr.bf16.mxu0 0
  %78 = vmatpush1.bf16.msra.mxu0 0
  %79 = vmatprep.subr.bf16.mxu0 0
  %80 = vmatpush1.bf16.msra.mxu0 0
  %81 = vmatprep.subr.bf16.mxu0 0
  %82 = vmatpush1.bf16.msra.mxu0 0
  %83 = vmatprep.subr.bf16.mxu0 0
  %84 = vmatpush1.bf16.msra.mxu0 0
  %85 = vmatprep.mubr.bf16.mxu0 0
  %86 = vmatmul.mubr.bf16.gmra.mrb[0].mxu0 %v51
  %v87 = vpop.f32.mrb[0].mxu0
  %v88 = vadd.f32 0.0, %v87
  %v89 = vpop.f32.mrb[0].mxu0
  %v90 = vpop.f32.mrb[0].mxu0
  %v91 = vpop.f32.mrb[0].mxu0
  %92 = vdwg.mxu0
  %v93 = vld [vmem:[%s0] sm:$0xff]
  %v94 = vadd.f32 %v93, %v88
  %v95 = vmul.f32 %v94, 0.5
  %v96 = vtanh.pop %v95
  %v97 = vmul.f32 %v96, 0.5
  %v98 = vadd.f32 %v97, 0.5
  %v99 = vtanh.pop %v94
  %101 = vrot.lane.b32.xlu0 %v35, 32
  %v102 = vpop.permute.xlu0 %101
  %v104 = vmul.f32 %v98, %v102
  %106 = vrot.lane.b32.xlu0 %v99, 64
  %v107 = vpop.permute.xlu0 %106
  %v109 = vmul.f32 %v98, %v107
  %111 = vrot.lane.b32.xlu0 %v109, 32
  %v112 = vpop.permute.xlu0 %111
  %v114 = vadd.f32 %v104, %v112
  %v115 = vtanh.pop %v114
  %117 = vrot.lane.b32.xlu0 %v115, 64
  %v118 = vpop.permute.xlu0 %117
  %v120 = vmul.f32 %v98, %v118
  %122 = vrot.lane.b32.xlu0 %v120, 32
  %v123 = vpop.permute.xlu0 %122
  %125 = vst.msk [vmem:[%s4] sm:$0xff] %vm49, %v123
  %v126 = vpack.c.bf16 %v120, %v120
  %128 = vrot.lane.b32.xlu0 %v126, 32
  %v129 = vpop.permute.xlu0 %128
  %v131 = vsel %vm49, %v129, 0
  %133 = vmatprep.subr.bf16.mxu0 0
  %134 = vmatpush1.bf16.msra.mxu0 %v45
  %135 = vmatprep.subr.bf16.mxu0 0
  %136 = vmatpush1.bf16.msra.mxu0 %v46
  %137 = vmatprep.subr.bf16.mxu0 0
  %138 = vmatpush1.bf16.msra.mxu0 0
  %139 = vmatprep.subr.bf16.mxu0 0
  %140 = vmatpush1.bf16.msra.mxu0 0
  %141 = vmatprep.subr.bf16.mxu0 0
  %142 = vmatpush1.bf16.msra.mxu0 0
  %143 = vmatprep.subr.bf16.mxu0 0
  %144 = vmatpush1.bf16.msra.mxu0 0
  %145 = vmatprep.subr.bf16.mxu0 0
  %146 = vmatpush1.bf16.msra.mxu0 0
  %147 = vmatprep.subr.bf16.mxu0 0
  %148 = vmatpush1.bf16.msra.mxu0 0
  %149 = vmatprep.subr.bf16.mxu0 0
  %150 = vmatpush1.bf16.msra.mxu0 0
  %151 = vmatprep.subr.bf16.mxu0 0
  %152 = vmatpush1.bf16.msra.mxu0 0
  %153 = vmatprep.subr.bf16.mxu0 0
  %154 = vmatpush1.bf16.msra.mxu0 0
  %155 = vmatprep.subr.bf16.mxu0 0
  %156 = vmatpush1.bf16.msra.mxu0 0
  %157 = vmatprep.subr.bf16.mxu0 0
  %158 = vmatpush1.bf16.msra.mxu0 0
  %159 = vmatprep.subr.bf16.mxu0 0
  %160 = vmatpush1.bf16.msra.mxu0 0
  %161 = vmatprep.subr.bf16.mxu0 0
  %162 = vmatpush1.bf16.msra.mxu0 0
  %163 = vmatprep.subr.bf16.mxu0 0
  %164 = vmatpush1.bf16.msra.mxu0 0
  %165 = vmatprep.mubr.bf16.mxu0 0
  %166 = vmatmul.mubr.bf16.gmra.mrb[0].mxu0 %v131
  %v167 = vpop.f32.mrb[0].mxu0
  %v168 = vadd.f32 0.0, %v167
  %v169 = vpop.f32.mrb[0].mxu0
  %v170 = vpop.f32.mrb[0].mxu0
  %v171 = vpop.f32.mrb[0].mxu0
  %172 = vdwg.mxu0
  %s173 = scalar_lea.vmem %s0, 8
  %v174 = vld [vmem:[%s173] sm:$0xff]
  %v175 = vadd.f32 %v174, %v168
  %v176 = vmul.f32 %v175, 0.5
  %v177 = vtanh.pop %v176
  %v178 = vmul.f32 %v177, 0.5
  %v179 = vadd.f32 %v178, 0.5
  %v180 = vtanh.pop %v175
  %v181 = vmul.f32 %v179, %v114
  %183 = vrot.lane.b32.xlu0 %v180, 64
  %v184 = vpop.permute.xlu0 %183
  %v186 = vmul.f32 %v179, %v184
  %188 = vrot.lane.b32.xlu0 %v186, 32
  %v189 = vpop.permute.xlu0 %188
  %v191 = vadd.f32 %v181, %v189
  %v192 = vtanh.pop %v191
  %194 = vrot.lane.b32.xlu0 %v192, 64
  %v195 = vpop.permute.xlu0 %194
  %v197 = vmul.f32 %v179, %v195
  %199 = vrot.lane.b32.xlu0 %v197, 32
  %v200 = vpop.permute.xlu0 %199
  %s202 = scalar_lea.vmem %s4, 8
  %203 = vst.msk [vmem:[%s202] sm:$0xff] %vm49, %v200
  %v204 = vpack.c.bf16 %v197, %v197
  %206 = vrot.lane.b32.xlu0 %v204, 32
  %v207 = vpop.permute.xlu0 %206
  %v209 = vsel %vm49, %v207, 0
  %211 = vmatprep.subr.bf16.mxu0 0
  %212 = vmatpush1.bf16.msra.mxu0 %v45
  %213 = vmatprep.subr.bf16.mxu0 0
  %214 = vmatpush1.bf16.msra.mxu0 %v46
  %215 = vmatprep.subr.bf16.mxu0 0
  %216 = vmatpush1.bf16.msra.mxu0 0
  %217 = vmatprep.subr.bf16.mxu0 0
  %218 = vmatpush1.bf16.msra.mxu0 0
  %219 = vmatprep.subr.bf16.mxu0 0
  %220 = vmatpush1.bf16.msra.mxu0 0
  %221 = vmatprep.subr.bf16.mxu0 0
  %222 = vmatpush1.bf16.msra.mxu0 0
  %223 = vmatprep.subr.bf16.mxu0 0
  %224 = vmatpush1.bf16.msra.mxu0 0
  %225 = vmatprep.subr.bf16.mxu0 0
  %226 = vmatpush1.bf16.msra.mxu0 0
  %227 = vmatprep.subr.bf16.mxu0 0
  %228 = vmatpush1.bf16.msra.mxu0 0
  %229 = vmatprep.subr.bf16.mxu0 0
  %230 = vmatpush1.bf16.msra.mxu0 0
  %231 = vmatprep.subr.bf16.mxu0 0
  %232 = vmatpush1.bf16.msra.mxu0 0
  %233 = vmatprep.subr.bf16.mxu0 0
  %234 = vmatpush1.bf16.msra.mxu0 0
  %235 = vmatprep.subr.bf16.mxu0 0
  %236 = vmatpush1.bf16.msra.mxu0 0
  %237 = vmatprep.subr.bf16.mxu0 0
  %238 = vmatpush1.bf16.msra.mxu0 0
  %239 = vmatprep.subr.bf16.mxu0 0
  %240 = vmatpush1.bf16.msra.mxu0 0
  %241 = vmatprep.subr.bf16.mxu0 0
  %242 = vmatpush1.bf16.msra.mxu0 0
  %243 = vmatprep.mubr.bf16.mxu0 0
  %244 = vmatmul.mubr.bf16.gmra.mrb[0].mxu0 %v209
  %v245 = vpop.f32.mrb[0].mxu0
  %v246 = vadd.f32 0.0, %v245
  %v247 = vpop.f32.mrb[0].mxu0
  %v248 = vpop.f32.mrb[0].mxu0
  %v249 = vpop.f32.mrb[0].mxu0
  %250 = vdwg.mxu0
  %s251 = scalar_lea.vmem %s0, 16
  %v252 = vld [vmem:[%s251] sm:$0xff]
  %v253 = vadd.f32 %v252, %v246
  %v254 = vmul.f32 %v253, 0.5
  %v255 = vtanh.pop %v254
  %v256 = vmul.f32 %v255, 0.5
  %v257 = vadd.f32 %v256, 0.5
  %v258 = vtanh.pop %v253
  %v259 = vmul.f32 %v257, %v191
  %261 = vrot.lane.b32.xlu0 %v258, 64
  %v262 = vpop.permute.xlu0 %261
  %v264 = vmul.f32 %v257, %v262
  %266 = vrot.lane.b32.xlu0 %v264, 32
  %v267 = vpop.permute.xlu0 %266
  %v269 = vadd.f32 %v259, %v267
  %v270 = vtanh.pop %v269
  %272 = vrot.lane.b32.xlu0 %v270, 64
  %v273 = vpop.permute.xlu0 %272
  %v275 = vmul.f32 %v257, %v273
  %277 = vrot.lane.b32.xlu0 %v275, 32
  %v278 = vpop.permute.xlu0 %277
  %s280 = scalar_lea.vmem %s4, 16
  %281 = vst.msk [vmem:[%s280] sm:$0xff] %vm49, %v278
  %v282 = vpack.c.bf16 %v275, %v275
  %284 = vrot.lane.b32.xlu0 %v282, 32
  %v285 = vpop.permute.xlu0 %284
  %v287 = vsel %vm49, %v285, 0
  %289 = vmatprep.subr.bf16.mxu0 0
  %290 = vmatpush1.bf16.msra.mxu0 %v45
  %291 = vmatprep.subr.bf16.mxu0 0
  %292 = vmatpush1.bf16.msra.mxu0 %v46
  %293 = vmatprep.subr.bf16.mxu0 0
  %294 = vmatpush1.bf16.msra.mxu0 0
  %295 = vmatprep.subr.bf16.mxu0 0
  %296 = vmatpush1.bf16.msra.mxu0 0
  %297 = vmatprep.subr.bf16.mxu0 0
  %298 = vmatpush1.bf16.msra.mxu0 0
  %299 = vmatprep.subr.bf16.mxu0 0
  %300 = vmatpush1.bf16.msra.mxu0 0
  %301 = vmatprep.subr.bf16.mxu0 0
  %302 = vmatpush1.bf16.msra.mxu0 0
  %303 = vmatprep.subr.bf16.mxu0 0
  %304 = vmatpush1.bf16.msra.mxu0 0
  %305 = vmatprep.subr.bf16.mxu0 0
  %306 = vmatpush1.bf16.msra.mxu0 0
  %307 = vmatprep.subr.bf16.mxu0 0
  %308 = vmatpush1.bf16.msra.mxu0 0
  %309 = vmatprep.subr.bf16.mxu0 0
  %310 = vmatpush1.bf16.msra.mxu0 0
  %311 = vmatprep.subr.bf16.mxu0 0
  %312 = vmatpush1.bf16.msra.mxu0 0
  %313 = vmatprep.subr.bf16.mxu0 0
  %314 = vmatpush1.bf16.msra.mxu0 0
  %315 = vmatprep.subr.bf16.mxu0 0
  %316 = vmatpush1.bf16.msra.mxu0 0
  %317 = vmatprep.subr.bf16.mxu0 0
  %318 = vmatpush1.bf16.msra.mxu0 0
  %319 = vmatprep.subr.bf16.mxu0 0
  %320 = vmatpush1.bf16.msra.mxu0 0
  %321 = vmatprep.mubr.bf16.mxu0 0
  %322 = vmatmul.mubr.bf16.gmra.mrb[0].mxu0 %v287
  %v323 = vpop.f32.mrb[0].mxu0
  %v324 = vadd.f32 0.0, %v323
  %v325 = vpop.f32.mrb[0].mxu0
  %v326 = vpop.f32.mrb[0].mxu0
  %v327 = vpop.f32.mrb[0].mxu0
  %328 = vdwg.mxu0
  %s329 = scalar_lea.vmem %s0, 24
  %v330 = vld [vmem:[%s329] sm:$0xff]
  %v331 = vadd.f32 %v330, %v324
  %v332 = vmul.f32 %v331, 0.5
  %v333 = vtanh.pop %v332
  %v334 = vmul.f32 %v333, 0.5
  %v335 = vadd.f32 %v334, 0.5
  %v336 = vtanh.pop %v331
  %v337 = vmul.f32 %v335, %v269
  %339 = vrot.lane.b32.xlu0 %v336, 64
  %v340 = vpop.permute.xlu0 %339
  %v342 = vmul.f32 %v335, %v340
  %344 = vrot.lane.b32.xlu0 %v342, 32
  %v345 = vpop.permute.xlu0 %344
  %v347 = vadd.f32 %v337, %v345
  %v348 = vtanh.pop %v347
  %350 = vrot.lane.b32.xlu0 %v348, 64
  %v351 = vpop.permute.xlu0 %350
  %v353 = vmul.f32 %v335, %v351
  %355 = vrot.lane.b32.xlu0 %v353, 32
  %v356 = vpop.permute.xlu0 %355
  %s358 = scalar_lea.vmem %s4, 24
  %359 = vst.msk [vmem:[%s358] sm:$0xff] %vm49, %v356
  %v360 = vpack.c.bf16 %v353, %v353
  %362 = vrot.lane.b32.xlu0 %v360, 32
  %v363 = vpop.permute.xlu0 %362
  %v365 = vsel %vm49, %v363, 0
  %367 = vmatprep.subr.bf16.mxu0 0
  %368 = vmatpush1.bf16.msra.mxu0 %v45
  %369 = vmatprep.subr.bf16.mxu0 0
  %370 = vmatpush1.bf16.msra.mxu0 %v46
  %371 = vmatprep.subr.bf16.mxu0 0
  %372 = vmatpush1.bf16.msra.mxu0 0
  %373 = vmatprep.subr.bf16.mxu0 0
  %374 = vmatpush1.bf16.msra.mxu0 0
  %375 = vmatprep.subr.bf16.mxu0 0
  %376 = vmatpush1.bf16.msra.mxu0 0
  %377 = vmatprep.subr.bf16.mxu0 0
  %378 = vmatpush1.bf16.msra.mxu0 0
  %379 = vmatprep.subr.bf16.mxu0 0
  %380 = vmatpush1.bf16.msra.mxu0 0
  %381 = vmatprep.subr.bf16.mxu0 0
  %382 = vmatpush1.bf16.msra.mxu0 0
  %383 = vmatprep.subr.bf16.mxu0 0
  %384 = vmatpush1.bf16.msra.mxu0 0
  %385 = vmatprep.subr.bf16.mxu0 0
  %386 = vmatpush1.bf16.msra.mxu0 0
  %387 = vmatprep.subr.bf16.mxu0 0
  %388 = vmatpush1.bf16.msra.mxu0 0
  %389 = vmatprep.subr.bf16.mxu0 0
  %390 = vmatpush1.bf16.msra.mxu0 0
  %391 = vmatprep.subr.bf16.mxu0 0
  %392 = vmatpush1.bf16.msra.mxu0 0
  %393 = vmatprep.subr.bf16.mxu0 0
  %394 = vmatpush1.bf16.msra.mxu0 0
  %395 = vmatprep.subr.bf16.mxu0 0
  %396 = vmatpush1.bf16.msra.mxu0 0
  %397 = vmatprep.subr.bf16.mxu0 0
  %398 = vmatpush1.bf16.msra.mxu0 0
  %399 = vmatprep.mubr.bf16.mxu0 0
  %400 = vmatmul.mubr.bf16.gmra.mrb[0].mxu0 %v365
  %v401 = vpop.f32.mrb[0].mxu0
  %v402 = vadd.f32 0.0, %v401
  %v403 = vpop.f32.mrb[0].mxu0
  %v404 = vpop.f32.mrb[0].mxu0
  %v405 = vpop.f32.mrb[0].mxu0
  %406 = vdwg.mxu0
  %s407 = scalar_lea.vmem %s0, 32
  %v408 = vld [vmem:[%s407] sm:$0xff]
  %v409 = vadd.f32 %v408, %v402
  %v410 = vmul.f32 %v409, 0.5
  %v411 = vtanh.pop %v410
  %v412 = vmul.f32 %v411, 0.5
  %v413 = vadd.f32 %v412, 0.5
  %v414 = vtanh.pop %v409
  %v415 = vmul.f32 %v413, %v347
  %417 = vrot.lane.b32.xlu0 %v414, 64
  %v418 = vpop.permute.xlu0 %417
  %v420 = vmul.f32 %v413, %v418
  %422 = vrot.lane.b32.xlu0 %v420, 32
  %v423 = vpop.permute.xlu0 %422
  %v425 = vadd.f32 %v415, %v423
  %v426 = vtanh.pop %v425
  %428 = vrot.lane.b32.xlu0 %v426, 64
  %v429 = vpop.permute.xlu0 %428
  %v431 = vmul.f32 %v413, %v429
  %433 = vrot.lane.b32.xlu0 %v431, 32
  %v434 = vpop.permute.xlu0 %433
  %s436 = scalar_lea.vmem %s4, 32
  %437 = vst.msk [vmem:[%s436] sm:$0xff] %vm49, %v434
  %v438 = vpack.c.bf16 %v431, %v431
  %440 = vrot.lane.b32.xlu0 %v438, 32
  %v441 = vpop.permute.xlu0 %440
  %v443 = vsel %vm49, %v441, 0
  %445 = vmatprep.subr.bf16.mxu0 0
  %446 = vmatpush1.bf16.msra.mxu0 %v45
  %447 = vmatprep.subr.bf16.mxu0 0
  %448 = vmatpush1.bf16.msra.mxu0 %v46
  %449 = vmatprep.subr.bf16.mxu0 0
  %450 = vmatpush1.bf16.msra.mxu0 0
  %451 = vmatprep.subr.bf16.mxu0 0
  %452 = vmatpush1.bf16.msra.mxu0 0
  %453 = vmatprep.subr.bf16.mxu0 0
  %454 = vmatpush1.bf16.msra.mxu0 0
  %455 = vmatprep.subr.bf16.mxu0 0
  %456 = vmatpush1.bf16.msra.mxu0 0
  %457 = vmatprep.subr.bf16.mxu0 0
  %458 = vmatpush1.bf16.msra.mxu0 0
  %459 = vmatprep.subr.bf16.mxu0 0
  %460 = vmatpush1.bf16.msra.mxu0 0
  %461 = vmatprep.subr.bf16.mxu0 0
  %462 = vmatpush1.bf16.msra.mxu0 0
  %463 = vmatprep.subr.bf16.mxu0 0
  %464 = vmatpush1.bf16.msra.mxu0 0
  %465 = vmatprep.subr.bf16.mxu0 0
  %466 = vmatpush1.bf16.msra.mxu0 0
  %467 = vmatprep.subr.bf16.mxu0 0
  %468 = vmatpush1.bf16.msra.mxu0 0
  %469 = vmatprep.subr.bf16.mxu0 0
  %470 = vmatpush1.bf16.msra.mxu0 0
  %471 = vmatprep.subr.bf16.mxu0 0
  %472 = vmatpush1.bf16.msra.mxu0 0
  %473 = vmatprep.subr.bf16.mxu0 0
  %474 = vmatpush1.bf16.msra.mxu0 0
  %475 = vmatprep.subr.bf16.mxu0 0
  %476 = vmatpush1.bf16.msra.mxu0 0
  %477 = vmatprep.mubr.bf16.mxu0 0
  %478 = vmatmul.mubr.bf16.gmra.mrb[0].mxu0 %v443
  %v479 = vpop.f32.mrb[0].mxu0
  %v480 = vadd.f32 0.0, %v479
  %v481 = vpop.f32.mrb[0].mxu0
  %v482 = vpop.f32.mrb[0].mxu0
  %v483 = vpop.f32.mrb[0].mxu0
  %484 = vdwg.mxu0
  %s485 = scalar_lea.vmem %s0, 40
  %v486 = vld [vmem:[%s485] sm:$0xff]
  %v487 = vadd.f32 %v486, %v480
  %v488 = vmul.f32 %v487, 0.5
  %v489 = vtanh.pop %v488
  %v490 = vmul.f32 %v489, 0.5
  %v491 = vadd.f32 %v490, 0.5
  %v492 = vtanh.pop %v487
  %v493 = vmul.f32 %v491, %v425
  %495 = vrot.lane.b32.xlu0 %v492, 64
  %v496 = vpop.permute.xlu0 %495
  %v498 = vmul.f32 %v491, %v496
  %500 = vrot.lane.b32.xlu0 %v498, 32
  %v501 = vpop.permute.xlu0 %500
  %v503 = vadd.f32 %v493, %v501
  %v504 = vtanh.pop %v503
  %506 = vrot.lane.b32.xlu0 %v504, 64
  %v507 = vpop.permute.xlu0 %506
  %v509 = vmul.f32 %v491, %v507
  %511 = vrot.lane.b32.xlu0 %v509, 32
  %v512 = vpop.permute.xlu0 %511
  %s514 = scalar_lea.vmem %s4, 40
  %515 = vst.msk [vmem:[%s514] sm:$0xff] %vm49, %v512
  %v516 = vpack.c.bf16 %v509, %v509
  %518 = vrot.lane.b32.xlu0 %v516, 32
  %v519 = vpop.permute.xlu0 %518
  %v521 = vsel %vm49, %v519, 0
  %523 = vmatprep.subr.bf16.mxu0 0
  %524 = vmatpush1.bf16.msra.mxu0 %v45
  %525 = vmatprep.subr.bf16.mxu0 0
  %526 = vmatpush1.bf16.msra.mxu0 %v46
  %527 = vmatprep.subr.bf16.mxu0 0
  %528 = vmatpush1.bf16.msra.mxu0 0
  %529 = vmatprep.subr.bf16.mxu0 0
  %530 = vmatpush1.bf16.msra.mxu0 0
  %531 = vmatprep.subr.bf16.mxu0 0
  %532 = vmatpush1.bf16.msra.mxu0 0
  %533 = vmatprep.subr.bf16.mxu0 0
  %534 = vmatpush1.bf16.msra.mxu0 0
  %535 = vmatprep.subr.bf16.mxu0 0
  %536 = vmatpush1.bf16.msra.mxu0 0
  %537 = vmatprep.subr.bf16.mxu0 0
  %538 = vmatpush1.bf16.msra.mxu0 0
  %539 = vmatprep.subr.bf16.mxu0 0
  %540 = vmatpush1.bf16.msra.mxu0 0
  %541 = vmatprep.subr.bf16.mxu0 0
  %542 = vmatpush1.bf16.msra.mxu0 0
  %543 = vmatprep.subr.bf16.mxu0 0
  %544 = vmatpush1.bf16.msra.mxu0 0
  %545 = vmatprep.subr.bf16.mxu0 0
  %546 = vmatpush1.bf16.msra.mxu0 0
  %547 = vmatprep.subr.bf16.mxu0 0
  %548 = vmatpush1.bf16.msra.mxu0 0
  %549 = vmatprep.subr.bf16.mxu0 0
  %550 = vmatpush1.bf16.msra.mxu0 0
  %551 = vmatprep.subr.bf16.mxu0 0
  %552 = vmatpush1.bf16.msra.mxu0 0
  %553 = vmatprep.subr.bf16.mxu0 0
  %554 = vmatpush1.bf16.msra.mxu0 0
  %555 = vmatprep.mubr.bf16.mxu0 0
  %556 = vmatmul.mubr.bf16.gmra.mrb[0].mxu0 %v521
  %v557 = vpop.f32.mrb[0].mxu0
  %v558 = vadd.f32 0.0, %v557
  %v559 = vpop.f32.mrb[0].mxu0
  %v560 = vpop.f32.mrb[0].mxu0
  %v561 = vpop.f32.mrb[0].mxu0
  %562 = vdwg.mxu0
  %s563 = scalar_lea.vmem %s0, 48
  %v564 = vld [vmem:[%s563] sm:$0xff]
  %v565 = vadd.f32 %v564, %v558
  %v566 = vmul.f32 %v565, 0.5
  %v567 = vtanh.pop %v566
  %v568 = vmul.f32 %v567, 0.5
  %v569 = vadd.f32 %v568, 0.5
  %v570 = vtanh.pop %v565
  %v571 = vmul.f32 %v569, %v503
  %573 = vrot.lane.b32.xlu0 %v570, 64
  %v574 = vpop.permute.xlu0 %573
  %v576 = vmul.f32 %v569, %v574
  %578 = vrot.lane.b32.xlu0 %v576, 32
  %v579 = vpop.permute.xlu0 %578
  %v581 = vadd.f32 %v571, %v579
  %v582 = vtanh.pop %v581
  %584 = vrot.lane.b32.xlu0 %v582, 64
  %v585 = vpop.permute.xlu0 %584
  %v587 = vmul.f32 %v569, %v585
  %589 = vrot.lane.b32.xlu0 %v587, 32
  %v590 = vpop.permute.xlu0 %589
  %s592 = scalar_lea.vmem %s4, 48
  %593 = vst.msk [vmem:[%s592] sm:$0xff] %vm49, %v590
  %v594 = vpack.c.bf16 %v587, %v587
  %596 = vrot.lane.b32.xlu0 %v594, 32
  %v597 = vpop.permute.xlu0 %596
  %v599 = vsel %vm49, %v597, 0
  %601 = vmatprep.subr.bf16.mxu0 0
  %602 = vmatpush1.bf16.msra.mxu0 %v45
  %603 = vmatprep.subr.bf16.mxu0 0
  %604 = vmatpush1.bf16.msra.mxu0 %v46
  %605 = vmatprep.subr.bf16.mxu0 0
  %606 = vmatpush1.bf16.msra.mxu0 0
  %607 = vmatprep.subr.bf16.mxu0 0
  %608 = vmatpush1.bf16.msra.mxu0 0
  %609 = vmatprep.subr.bf16.mxu0 0
  %610 = vmatpush1.bf16.msra.mxu0 0
  %611 = vmatprep.subr.bf16.mxu0 0
  %612 = vmatpush1.bf16.msra.mxu0 0
  %613 = vmatprep.subr.bf16.mxu0 0
  %614 = vmatpush1.bf16.msra.mxu0 0
  %615 = vmatprep.subr.bf16.mxu0 0
  %616 = vmatpush1.bf16.msra.mxu0 0
  %617 = vmatprep.subr.bf16.mxu0 0
  %618 = vmatpush1.bf16.msra.mxu0 0
  %619 = vmatprep.subr.bf16.mxu0 0
  %620 = vmatpush1.bf16.msra.mxu0 0
  %621 = vmatprep.subr.bf16.mxu0 0
  %622 = vmatpush1.bf16.msra.mxu0 0
  %623 = vmatprep.subr.bf16.mxu0 0
  %624 = vmatpush1.bf16.msra.mxu0 0
  %625 = vmatprep.subr.bf16.mxu0 0
  %626 = vmatpush1.bf16.msra.mxu0 0
  %627 = vmatprep.subr.bf16.mxu0 0
  %628 = vmatpush1.bf16.msra.mxu0 0
  %629 = vmatprep.subr.bf16.mxu0 0
  %630 = vmatpush1.bf16.msra.mxu0 0
  %631 = vmatprep.subr.bf16.mxu0 0
  %632 = vmatpush1.bf16.msra.mxu0 0
  %633 = vmatprep.mubr.bf16.mxu0 0
  %634 = vmatmul.mubr.bf16.gmra.mrb[0].mxu0 %v599
  %v635 = vpop.f32.mrb[0].mxu0
  %v636 = vadd.f32 0.0, %v635
  %v637 = vpop.f32.mrb[0].mxu0
  %v638 = vpop.f32.mrb[0].mxu0
  %v639 = vpop.f32.mrb[0].mxu0
  %640 = vdwg.mxu0
  %s641 = scalar_lea.vmem %s0, 56
  %v642 = vld [vmem:[%s641] sm:$0xff]
  %v643 = vadd.f32 %v642, %v636
  %v644 = vmul.f32 %v643, 0.5
  %v645 = vtanh.pop %v644
  %v646 = vmul.f32 %v645, 0.5
  %v647 = vadd.f32 %v646, 0.5
  %v648 = vtanh.pop %v643
  %v649 = vmul.f32 %v647, %v581
  %651 = vrot.lane.b32.xlu0 %v648, 64
  %v652 = vpop.permute.xlu0 %651
  %v654 = vmul.f32 %v647, %v652
  %656 = vrot.lane.b32.xlu0 %v654, 32
  %v657 = vpop.permute.xlu0 %656
  %v659 = vadd.f32 %v649, %v657
  %v660 = vtanh.pop %v659
  %662 = vrot.lane.b32.xlu0 %v660, 64
  %v663 = vpop.permute.xlu0 %662
  %v665 = vmul.f32 %v647, %v663
  %667 = vrot.lane.b32.xlu0 %v665, 32
  %v668 = vpop.permute.xlu0 %667
  %s670 = scalar_lea.vmem %s4, 56
  %671 = vst.msk [vmem:[%s670] sm:$0xff] %vm49, %v668
  %672 = vst.msk [vmem:[#allocation2] sm:$0xff] %vm49, %v668
  %674 = vrot.lane.b32.xlu0 %v659, 96
  %v675 = vpop.permute.xlu0 %674
  %677 = vst.msk [vmem:[#allocation3] sm:$0xff] %vm49, %v675
  // Predicated region
  $region22: #{lstm1fc_forward.1} parent=0 // pred_check
    %p678 = pneg %p21
  $region23: #{lstm1fc_forward.1} parent=0 // pred_check_branch
    %680 = sbr.rel (%p678) target = $region25
  $region24: #{lstm1fc_forward.1} parent=0 // pred_region
    %681 = vst.msk [vmem:[%s5] sm:$0xff] %vm49, %v668
    %682 = vst.msk [vmem:[%s6] sm:$0xff] %vm49, %v675
  $region25: #{lstm1fc_forward.1} parent=0 // pred_fallthru
    _
  // Predicated region
  $region26: #{lstm1fc_forward.1} parent=0 // pred_check
    _
  $region27: #{lstm1fc_forward.1} parent=0 // pred_check_branch
    %684 = sbr.rel (0) target = $region29
  $region28: #{lstm1fc_forward.1} parent=0 // pred_region
    _
  $region29: #{lstm1fc_forward.1} parent=0 // pred_fallthru
    _
  // Predicated region
  $region30: #{lstm1fc_forward.1} parent=0 // pred_check
    _
  $region31: #{lstm1fc_forward.1} parent=0 // pred_check_branch
    %686 = sbr.rel (0) target = $region33
  $region32: #{lstm1fc_forward.1} parent=0 // pred_region
    _
  $region33: #{lstm1fc_forward.1} parent=0 // pred_fallthru
    _
  // Predicated region
  $region34: #{lstm1fc_forward.1} parent=0 // pred_check
    _
  $region35: #{lstm1fc_forward.1} parent=0 // pred_check_branch
    %688 = sbr.rel (0) target = $region37
  $region36: #{lstm1fc_forward.1} parent=0 // pred_region
    _
  $region37: #{lstm1fc_forward.1} parent=0 // pred_fallthru
    _
  // Predicated region
  $region38: #{lstm1fc_forward.1} parent=0 // pred_check
    _
  $region39: #{lstm1fc_forward.1} parent=0 // pred_check_branch
    %690 = sbr.rel (0) target = $region41
  $region40: #{lstm1fc_forward.1} parent=0 // pred_region
    _
  $region41: #{lstm1fc_forward.1} parent=0 // pred_fallthru
    _
  // Predicated region
  $region42: #{lstm1fc_forward.1} parent=0 // pred_check
    _
  $region43: #{lstm1fc_forward.1} parent=0 // pred_check_branch
    %692 = sbr.rel (0) target = $region45
  $region44: #{lstm1fc_forward.1} parent=0 // pred_region
    _
  $region45: #{lstm1fc_forward.1} parent=0 // pred_fallthru
    _
  // Predicated region
  $region46: #{lstm1fc_forward.1} parent=0 // pred_check
    _
  $region47: #{lstm1fc_forward.1} parent=0 // pred_check_branch
    %694 = sbr.rel (0) target = $region49
  $region48: #{lstm1fc_forward.1} parent=0 // pred_region
    _
  $region49: #{lstm1fc_forward.1} parent=0 // pred_fallthru
    _

</llo_original>
